<compile_context>
chip_gen: v7x
topology: tpu7x:2x2x1
jax: 0.10.0
libtpu: 0.0.40
codegen_flags: <defaults>
</compile_context>

<pallas_src>
import functools

import jax
import jax.numpy as jnp
import numpy as np
from jax.experimental import pallas as pl
from jax.experimental.pallas import tpu as pltpu


def _round_up(x, m):
    return ((x + m - 1) // m) * m


# ----------------------------- Pallas kernel --------------------------------
def critic_q_kernel(x_ref, w1_ref, b1_ref, w2_ref, b2_ref, w3_ref, b3_ref,
                    wo_ref, bo_ref, out_ref, *, lane_dense):
    # fc_1 .. fc_3: bf16 MXU matmuls with f32 accumulation, relu on the VPU.
    h = jnp.dot(x_ref[...], w1_ref[...], preferred_element_type=jnp.float32)
    h = jnp.maximum(h + b1_ref[...], 0.0)                      # relu(fc_1)

    h = jnp.dot(h.astype(jnp.bfloat16), w2_ref[...],
                preferred_element_type=jnp.float32)
    h = jnp.maximum(h + b2_ref[...], 0.0)                      # relu(fc_2)

    h = jnp.dot(h.astype(jnp.bfloat16), w3_ref[...],
                preferred_element_type=jnp.float32)
    h = jnp.maximum(h + b3_ref[...], 0.0)                      # relu(fc_3)

    # Output layer (H2 -> 1): VPU multiply + XLU lane reduction instead of a
    # degenerate (H2, 1) MXU matmul.
    prod = h * wo_ref[...]                                     # (TB, H2) f32
    if lane_dense:
        # (TB,) lane-major result -> unmasked stores, tiny output VMEM buffer.
        out_ref[...] = jnp.sum(prod, axis=-1) + bo_ref[0]
    else:
        out_ref[...] = jnp.sum(prod, axis=-1, keepdims=True) + bo_ref[...]


# -------------------------------- wrapper ------------------------------------
def _forward_impl(x, params, *, tile_b, lane_dense):
    (w1, b1), (w2, b2), (w3, b3), (wo, bo) = params
    B, Din = x.shape
    H2 = w2.shape[1]

    # Tile selection (review): one grid step when the whole batch fits a tile
    # (everything fits VMEM, pipelining would hide nothing); otherwise
    # 128-aligned tiles, which also yields >= 2 steps so the "parallel" axis
    # can shard across both TensorCores on v7x.
    if _round_up(B, 8) <= tile_b:
        TB = _round_up(B, 8)
    else:
        TB = _round_up(tile_b, 128)
    Bp = _round_up(B, TB)
    if Bp != B:
        # Padded rows produce relu(bias) garbage; sliced off below.
        x = jnp.pad(x, ((0, Bp - B), (0, 0)))

    wo_row = wo.astype(jnp.float32).reshape(1, H2)   # output weights as f32 row
    bo2 = bo.astype(jnp.float32).reshape(1, 1)

    const = lambda i: (0, 0)                         # weights stay VMEM-resident
    if lane_dense:
        out_shape = jax.ShapeDtypeStruct((Bp,), jnp.float32)
        out_spec = pl.BlockSpec((TB,), lambda i: (i,))
    else:
        out_shape = jax.ShapeDtypeStruct((Bp, 1), jnp.float32)
        out_spec = pl.BlockSpec((TB, 1), lambda i: (i, 0))

    out = pl.pallas_call(
        functools.partial(critic_q_kernel, lane_dense=lane_dense),
        out_shape=out_shape,
        grid_spec=pltpu.PrefetchScalarGridSpec(
            num_scalar_prefetch=0,
            grid=(Bp // TB,),
            in_specs=[
                pl.BlockSpec((TB, Din), lambda i: (i, 0)),
                pl.BlockSpec(w1.shape, const),
                pl.BlockSpec(b1.shape, const),
                pl.BlockSpec(w2.shape, const),
                pl.BlockSpec(b2.shape, const),
                pl.BlockSpec(w3.shape, const),
                pl.BlockSpec(b3.shape, const),
                pl.BlockSpec(wo_row.shape, const),
                pl.BlockSpec(bo2.shape, const),
            ],
            out_specs=out_spec,
        ),
        compiler_params=pltpu.CompilerParams(
            dimension_semantics=("parallel",),     # 2 TCs on v7x; no-op v5e/v6e
            vmem_limit_bytes=32 * 1024 * 1024,     # headroom for tile_b up to ~2048
        ),
    )(x, w1, b1, w2, b2, w3, b3, wo_row, bo2)

    if lane_dense:
        return out[:B][:, None]
    return out[:B]


@functools.partial(jax.jit, static_argnames=("tile_b", "lane_dense"))
def _forward_jit(state, action, params, tile_b, lane_dense):
    # bf16 inputs + fused concat in the wrapper (halves input DMA; one fc_1
    # matmul in the kernel instead of two partial matmuls).
    x = jnp.concatenate(
        [state.astype(jnp.bfloat16), action.astype(jnp.bfloat16)], axis=1)
    return _forward_impl(x, params, tile_b=tile_b, lane_dense=lane_dense)


_LANE_DENSE_OK = None   # feature-detect result for the lane-dense output path


def critic_q_forward(state, action, params, tile_b=1024):
    """Full MLP forward in one pallas_call; returns (B, 1) float32."""
    global _LANE_DENSE_OK
    if _LANE_DENSE_OK is not False:
        try:
            out = _forward_jit(state, action, params, tile_b, True)
            out = jax.block_until_ready(out)     # surface any lowering failure
            _LANE_DENSE_OK = True
            return out
        except Exception:
            # Mosaic build cannot relayout the 1-D reduce; use (TB, 1) stores.
            _LANE_DENSE_OK = False
    return _forward_jit(state, action, params, tile_b, False)


# --------------------------- parameter construction --------------------------
def make_params(key, state_size, action_size, h_1_size=256, h_2_size=128):
    """Synthetic init mirroring CriticQNetwork.reset_parameters().

    Weights are stored as [in, out] (transpose of PyTorch) so the kernel
    computes x @ W + b, and cast to bfloat16 (f32 accumulation in-kernel).
    """
    in_dim = 2 * (state_size + action_size)
    dims = [(in_dim, h_1_size), (h_1_size, h_2_size),
            (h_2_size, h_2_size), (h_2_size, 1)]
    params = []
    for i, (fin, fout) in enumerate(dims):
        key, kw, kb = jax.random.split(key, 3)
        w_lim = 0.003 if i == len(dims) - 1 else 1.0 / np.sqrt(fout)
        b_lim = 1.0 / np.sqrt(fin)
        w = jax.random.uniform(kw, (fin, fout), jnp.float32, -w_lim, w_lim)
        b = jax.random.uniform(kb, (1, fout), jnp.float32, -b_lim, b_lim)
        params.append((w.astype(jnp.bfloat16), b))   # bf16 weights, f32 biases
    return params


# -------------------------------- reference ----------------------------------
def critic_q_reference(state, action, params):
    """Pure-JAX reference mirroring the kernel's bf16-in / f32-accumulate math."""
    (w1, b1), (w2, b2), (w3, b3), (wo, bo) = params
    y = jnp.concatenate([state, action], axis=1).astype(jnp.bfloat16)
    y = jnp.maximum(jnp.dot(y, w1, preferred_element_type=jnp.float32) + b1, 0.0)
    y = jnp.maximum(jnp.dot(y.astype(jnp.bfloat16), w2,
                            preferred_element_type=jnp.float32) + b2, 0.0)
    y = jnp.maximum(jnp.dot(y.astype(jnp.bfloat16), w3,
                            preferred_element_type=jnp.float32) + b3, 0.0)
    wo_row = wo.astype(jnp.float32).reshape(1, -1)
    return jnp.sum(y * wo_row, axis=-1, keepdims=True) + bo


# ----------------------------------- main ------------------------------------
if __name__ == "__main__":
    # Per-agent state_size=12, action_size=4; forward takes the 2-agent stacked
    # state/action so fc_1.in_features = 2*(state_size+action_size) = 32.
    state_size, action_size = 12, 4

    key = jax.random.PRNGKey(0)
    key, kp = jax.random.split(key)
    params = make_params(kp, state_size, action_size)

    # Case 1: small batch -> single grid step (TB = round_up(B, 8), grid=(1,)).
    key, ks, ka = jax.random.split(key, 3)
    s1 = jax.random.normal(ks, (20, 2 * state_size), jnp.float32)
    a1 = jax.random.normal(ka, (20, 2 * action_size), jnp.float32)
    out1 = jax.block_until_ready(critic_q_forward(s1, a1, params))
    ref1 = critic_q_reference(s1, a1, params)
    assert out1.shape == (20, 1)
    np.testing.assert_allclose(np.asarray(out1), np.asarray(ref1),
                               rtol=2e-3, atol=2e-3)

    # Case 2: larger batch with a deliberately small tile so the pipelined
    # multi-step path (and last-tile padding) is exercised; production batches
    # would use the default tile_b=1024.
    key, ks, ka = jax.random.split(key, 3)
    s2 = jax.random.normal(ks, (300, 2 * state_size), jnp.float32)
    a2 = jax.random.normal(ka, (300, 2 * action_size), jnp.float32)
    out2 = jax.block_until_ready(critic_q_forward(s2, a2, params, tile_b=128))
    ref2 = critic_q_reference(s2, a2, params)
    assert out2.shape == (300, 1)
    np.testing.assert_allclose(np.asarray(out2), np.asarray(ref2),
                               rtol=2e-3, atol=2e-3)

    print("KERNEL_OK")
</pallas_src>

<mosaic_0001>
module attributes {stable_mosaic.version = 11 : i64} {
  func.func @critic_q_kernel(%arg0: i32, %arg1: memref<24x32xbf16, #tpu.memory_space<vmem>>, %arg2: memref<32x256xbf16, #tpu.memory_space<vmem>>, %arg3: memref<1x256xf32, #tpu.memory_space<vmem>>, %arg4: memref<256x128xbf16, #tpu.memory_space<vmem>>, %arg5: memref<1x128xf32, #tpu.memory_space<vmem>>, %arg6: memref<128x128xbf16, #tpu.memory_space<vmem>>, %arg7: memref<1x128xf32, #tpu.memory_space<vmem>>, %arg8: memref<1x128xf32, #tpu.memory_space<vmem>>, %arg9: memref<1x1xf32, #tpu.memory_space<vmem>>, %arg10: memref<24x1xf32, #tpu.memory_space<vmem>>) attributes {dimension_semantics = [#tpu.dimension_semantics<parallel>], iteration_bounds = array<i64: 1>, scalar_prefetch = 0 : i64, scratch_operands = 0 : i64, tpu.core_type = #tpu.core_type<tc>, window_params = [{transform_indices = @transform_0, window_bounds = array<i64: 24, 32>}, {pipeline_mode = #tpu.pipeline_mode<synchronous>, transform_indices = @transform_1, window_bounds = array<i64: 32, 256>}, {pipeline_mode = #tpu.pipeline_mode<synchronous>, transform_indices = @transform_2, window_bounds = array<i64: 1, 256>}, {pipeline_mode = #tpu.pipeline_mode<synchronous>, transform_indices = @transform_3, window_bounds = array<i64: 256, 128>}, {pipeline_mode = #tpu.pipeline_mode<synchronous>, transform_indices = @transform_4, window_bounds = array<i64: 1, 128>}, {pipeline_mode = #tpu.pipeline_mode<synchronous>, transform_indices = @transform_5, window_bounds = array<i64: 128, 128>}, {pipeline_mode = #tpu.pipeline_mode<synchronous>, transform_indices = @transform_6, window_bounds = array<i64: 1, 128>}, {pipeline_mode = #tpu.pipeline_mode<synchronous>, transform_indices = @transform_7, window_bounds = array<i64: 1, 128>}, {pipeline_mode = #tpu.pipeline_mode<synchronous>, transform_indices = @transform_8, window_bounds = array<i64: 1, 1>}, {transform_indices = @transform_9, window_bounds = array<i64: 24, 1>}]} {
    %c0 = arith.constant 0 : index
    %c0_0 = arith.constant 0 : index
    %0 = vector.load %arg1[%c0, %c0_0] : memref<24x32xbf16, #tpu.memory_space<vmem>>, vector<24x32xbf16>
    %c0_1 = arith.constant 0 : index
    %c0_2 = arith.constant 0 : index
    %1 = vector.load %arg2[%c0_1, %c0_2] : memref<32x256xbf16, #tpu.memory_space<vmem>>, vector<32x256xbf16>
    %cst = arith.constant dense<0.000000e+00> : vector<24x256xf32>
    %2 = tpu.matmul %0, %1, %cst {dimension_numbers = #tpu.dot_dimension_numbers<[1], [0], [0], [1], [0, 0, 1, 1], [], []>} : vector<24x32xbf16>, vector<32x256xbf16>, vector<24x256xf32> -> vector<24x256xf32>
    %c0_3 = arith.constant 0 : index
    %c0_4 = arith.constant 0 : index
    %3 = vector.load %arg3[%c0_3, %c0_4] : memref<1x256xf32, #tpu.memory_space<vmem>>, vector<1x256xf32>
    %4 = vector.broadcast %3 : vector<1x256xf32> to vector<24x256xf32>
    %5 = arith.addf %2, %4 : vector<24x256xf32>
    %cst_5 = arith.constant 0.000000e+00 : f32
    %6 = vector.broadcast %cst_5 : f32 to vector<24x256xf32>
    %7 = arith.maximumf %5, %6 : vector<24x256xf32>
    %8 = arith.truncf %7 : vector<24x256xf32> to vector<24x256xbf16>
    %c0_6 = arith.constant 0 : index
    %c0_7 = arith.constant 0 : index
    %9 = vector.load %arg4[%c0_6, %c0_7] : memref<256x128xbf16, #tpu.memory_space<vmem>>, vector<256x128xbf16>
    %cst_8 = arith.constant dense<0.000000e+00> : vector<24x128xf32>
    %10 = tpu.matmul %8, %9, %cst_8 {dimension_numbers = #tpu.dot_dimension_numbers<[1], [0], [0], [1], [0, 0, 1, 1], [], []>} : vector<24x256xbf16>, vector<256x128xbf16>, vector<24x128xf32> -> vector<24x128xf32>
    %c0_9 = arith.constant 0 : index
    %c0_10 = arith.constant 0 : index
    %11 = vector.load %arg5[%c0_9, %c0_10] : memref<1x128xf32, #tpu.memory_space<vmem>>, vector<1x128xf32>
    %12 = vector.broadcast %11 : vector<1x128xf32> to vector<24x128xf32>
    %13 = arith.addf %10, %12 : vector<24x128xf32>
    %cst_11 = arith.constant 0.000000e+00 : f32
    %14 = vector.broadcast %cst_11 : f32 to vector<24x128xf32>
    %15 = arith.maximumf %13, %14 : vector<24x128xf32>
    %16 = arith.truncf %15 : vector<24x128xf32> to vector<24x128xbf16>
    %c0_12 = arith.constant 0 : index
    %c0_13 = arith.constant 0 : index
    %17 = vector.load %arg6[%c0_12, %c0_13] : memref<128x128xbf16, #tpu.memory_space<vmem>>, vector<128x128xbf16>
    %cst_14 = arith.constant dense<0.000000e+00> : vector<24x128xf32>
    %18 = tpu.matmul %16, %17, %cst_14 {dimension_numbers = #tpu.dot_dimension_numbers<[1], [0], [0], [1], [0, 0, 1, 1], [], []>} : vector<24x128xbf16>, vector<128x128xbf16>, vector<24x128xf32> -> vector<24x128xf32>
    %c0_15 = arith.constant 0 : index
    %c0_16 = arith.constant 0 : index
    %19 = vector.load %arg7[%c0_15, %c0_16] : memref<1x128xf32, #tpu.memory_space<vmem>>, vector<1x128xf32>
    %20 = vector.broadcast %19 : vector<1x128xf32> to vector<24x128xf32>
    %21 = arith.addf %18, %20 : vector<24x128xf32>
    %cst_17 = arith.constant 0.000000e+00 : f32
    %22 = vector.broadcast %cst_17 : f32 to vector<24x128xf32>
    %23 = arith.maximumf %21, %22 : vector<24x128xf32>
    %c0_18 = arith.constant 0 : index
    %c0_19 = arith.constant 0 : index
    %24 = vector.load %arg8[%c0_18, %c0_19] : memref<1x128xf32, #tpu.memory_space<vmem>>, vector<1x128xf32>
    %25 = vector.broadcast %24 : vector<1x128xf32> to vector<24x128xf32>
    %26 = arith.mulf %23, %25 : vector<24x128xf32>
    %cst_20 = arith.constant dense<0.000000e+00> : vector<24xf32>
    %27 = vector.multi_reduction <add>, %26, %cst_20 [1] : vector<24x128xf32> to vector<24xf32>
    %28 = vector.shape_cast %27 : vector<24xf32> to vector<24x1xf32>
    %c0_21 = arith.constant 0 : index
    %c0_22 = arith.constant 0 : index
    %29 = vector.load %arg9[%c0_21, %c0_22] : memref<1x1xf32, #tpu.memory_space<vmem>>, vector<1x1xf32>
    %30 = vector.broadcast %29 : vector<1x1xf32> to vector<24x1xf32>
    %31 = arith.addf %28, %30 : vector<24x1xf32>
    %c0_23 = arith.constant 0 : index
    %c0_24 = arith.constant 0 : index
    %32 = vector.load %arg10[%c0_23, %c0_24] : memref<24x1xf32, #tpu.memory_space<vmem>>, vector<24x1xf32>
    tpu.vector_store %arg10[%c0_23, %c0_24], %31 {strides = array<i32>} : memref<24x1xf32, #tpu.memory_space<vmem>>, vector<24x1xf32>,
    return
  }
  func.func @transform_0(%arg0: i32) -> (i32, i32) {
    %c0_i32 = arith.constant 0 : i32
    %c0_i32_0 = arith.constant 0 : i32
    return %arg0, %c0_i32 : i32, i32
  }
  func.func @transform_1(%arg0: i32) -> (i32, i32) {
    %c0_i32 = arith.constant 0 : i32
    %c0_i32_0 = arith.constant 0 : i32
    %c0_i32_1 = arith.constant 0 : i32
    return %c0_i32, %c0_i32_0 : i32, i32
  }
  func.func @transform_2(%arg0: i32) -> (i32, i32) {
    %c0_i32 = arith.constant 0 : i32
    %c0_i32_0 = arith.constant 0 : i32
    %c0_i32_1 = arith.constant 0 : i32
    return %c0_i32, %c0_i32_0 : i32, i32
  }
  func.func @transform_3(%arg0: i32) -> (i32, i32) {
    %c0_i32 = arith.constant 0 : i32
    %c0_i32_0 = arith.constant 0 : i32
    %c0_i32_1 = arith.constant 0 : i32
    return %c0_i32, %c0_i32_0 : i32, i32
  }
  func.func @transform_4(%arg0: i32) -> (i32, i32) {
    %c0_i32 = arith.constant 0 : i32
    %c0_i32_0 = arith.constant 0 : i32
    %c0_i32_1 = arith.constant 0 : i32
    return %c0_i32, %c0_i32_0 : i32, i32
  }
  func.func @transform_5(%arg0: i32) -> (i32, i32) {
    %c0_i32 = arith.constant 0 : i32
    %c0_i32_0 = arith.constant 0 : i32
    %c0_i32_1 = arith.constant 0 : i32
    return %c0_i32, %c0_i32_0 : i32, i32
  }
  func.func @transform_6(%arg0: i32) -> (i32, i32) {
    %c0_i32 = arith.constant 0 : i32
    %c0_i32_0 = arith.constant 0 : i32
    %c0_i32_1 = arith.constant 0 : i32
    return %c0_i32, %c0_i32_0 : i32, i32
  }
  func.func @transform_7(%arg0: i32) -> (i32, i32) {
    %c0_i32 = arith.constant 0 : i32
    %c0_i32_0 = arith.constant 0 : i32
    %c0_i32_1 = arith.constant 0 : i32
    return %c0_i32, %c0_i32_0 : i32, i32
  }
  func.func @transform_8(%arg0: i32) -> (i32, i32) {
    %c0_i32 = arith.constant 0 : i32
    %c0_i32_0 = arith.constant 0 : i32
    %c0_i32_1 = arith.constant 0 : i32
    return %c0_i32, %c0_i32_0 : i32, i32
  }
  func.func @transform_9(%arg0: i32) -> (i32, i32) {
    %c0_i32 = arith.constant 0 : i32
    %c0_i32_0 = arith.constant 0 : i32
    return %arg0, %c0_i32 : i32, i32
  }
}

</mosaic_0001>

<llo_original>
// kernel: _forward_jit.1
$region0: #{_forward_jit.1}
  #allocation0 [shape = 'u32[]', space=smem, size = 0x4, offset = 0x4, fixed_abs, tag = 'smem constant byte address 0x4 - core index']
  #allocation1 [shape = 'u32[144,128]{1,0:T(1,128)}', space=vmem, size = 0x12000, scoped, tag = 'internal scratch']
  #allocation2 [shape = 'f32[1,1]{1,0:T(1,128)S(1)}', space=vmem, size = 0x200, scoped, tag = 'scoped memory for _forward_jit.1']
  %s0 = inlined_call_operand.vmem [shape: bf16[24,32], index: 0, kind: input, shape index: {}]
  %s1 = inlined_call_operand.vmem [shape: bf16[32,256], index: 1, kind: input, shape index: {}]
  %s2 = inlined_call_operand.vmem [shape: f32[1,256], index: 2, kind: input, shape index: {}]
  %s3 = inlined_call_operand.hbm [shape: bf16[256,128], index: 3, kind: input, shape index: {}]
  %s4 = inlined_call_operand.vmem [shape: f32[1,128], index: 4, kind: input, shape index: {}]
  %s5 = inlined_call_operand.vmem [shape: bf16[128,128], index: 5, kind: input, shape index: {}]
  %s6 = inlined_call_operand.vmem [shape: f32[1,128], index: 6, kind: input, shape index: {}]
  %s7 = inlined_call_operand.vmem [shape: f32[1,128], index: 7, kind: input, shape index: {}]
  %s8 = inlined_call_operand.<no memory space> [shape: f32[1,1], index: 8, kind: input, shape index: {}]
  %s9 = inlined_call_operand.vmem [shape: f32[24,1], index: 9, kind: output, shape index: {}]
  %s10 = sld [smem:[#allocation0]]
  $region50: #{_forward_jit.1} parent=0
    _
  %s12 = ssub.s32 1, %s10
  %s13 = scalar_select 0, %s12, %s10
  %v14 = vstv %s8
  %15 = vst [vmem:[#allocation2] sm:$0x1] %v14
  $region1: #{_forward_jit.1} parent=0
    #allocation3 [shape = 'u8[65536]{0}', space=vmem, size = 0x10000, scoped, tag = 'input window, operand 3, single buffered']
    #allocation4 [shape = 's32[1]{0}', space=sflag, size = 0x4, scoped, tag = 'scoped memory for _forward_jit.1']
    %16 = vsyncpa [#allocation4], 0
    // Predicated region
    $region2: #{_forward_jit.1} parent=1 // pred_check
      _
    $region3: #{_forward_jit.1} parent=1 // pred_check_branch
      %18 = sbr.rel (0) target = $region5
    $region4: #{_forward_jit.1} parent=1 // pred_region
      _
    $region5: #{_forward_jit.1} parent=1 // pred_fallthru
      _
    // Predicated region
    $region6: #{_forward_jit.1} parent=1 // pred_check
      _
    $region7: #{_forward_jit.1} parent=1 // pred_check_branch
      %20 = sbr.rel (0) target = $region9
    $region8: #{_forward_jit.1} parent=1 // pred_region
      _
    $region9: #{_forward_jit.1} parent=1 // pred_fallthru
      _
    // Predicated region
    $region10: #{_forward_jit.1} parent=1 // pred_check
      _
    $region11: #{_forward_jit.1} parent=1 // pred_check_branch
      %22 = sbr.rel (0) target = $region13
    $region12: #{_forward_jit.1} parent=1 // pred_region
      _
    $region13: #{_forward_jit.1} parent=1 // pred_fallthru
      _
    // Predicated region
    $region14: #{_forward_jit.1} parent=1 // pred_check
      _
    $region15: #{_forward_jit.1} parent=1 // pred_check_branch
      %24 = sbr.rel (0) target = $region17
    $region16: #{_forward_jit.1} parent=1 // pred_region
      %s26 = ssub.s32 2048, 2048
      %27 = vsyncadd [#allocation4], %s26
      %s28 = sshll.u32 [#allocation3], 4
      %s29 = int_to_ptr.vmem [resolvable:$true] %s28
      %34 = dma.hbm_to_vmem [thread:$0]  %s3, 2048, %s29, [#allocation4], 64, 64, 4
    $region17: #{_forward_jit.1} parent=1 // pred_fallthru
      _
    // Predicated region
    $region18: #{_forward_jit.1} parent=1 // pred_check
      _
    $region19: #{_forward_jit.1} parent=1 // pred_check_branch
      %36 = sbr.rel (0) target = $region21
    $region20: #{_forward_jit.1} parent=1 // pred_region
      _
    $region21: #{_forward_jit.1} parent=1 // pred_fallthru
      _
    // Predicated region
    $region22: #{_forward_jit.1} parent=1 // pred_check
      _
    $region23: #{_forward_jit.1} parent=1 // pred_check_branch
      %38 = sbr.rel (0) target = $region25
    $region24: #{_forward_jit.1} parent=1 // pred_region
      _
    $region25: #{_forward_jit.1} parent=1 // pred_fallthru
      _
    // Predicated region
    $region26: #{_forward_jit.1} parent=1 // pred_check
      _
    $region27: #{_forward_jit.1} parent=1 // pred_check_branch
      %40 = sbr.rel (0) target = $region29
    $region28: #{_forward_jit.1} parent=1 // pred_region
      _
    $region29: #{_forward_jit.1} parent=1 // pred_fallthru
      _
    // Predicated region
    $region30: #{_forward_jit.1} parent=1 // pred_check
      _
    $region31: #{_forward_jit.1} parent=1 // pred_check_branch
      %42 = sbr.rel (0) target = $region33
    $region32: #{_forward_jit.1} parent=1 // pred_region
      _
    $region33: #{_forward_jit.1} parent=1 // pred_fallthru
      _
    // Predicated region
    $region34: #{_forward_jit.1} parent=1 // pred_check
      _
    $region35: #{_forward_jit.1} parent=1 // pred_check_branch
      %44 = sbr.rel (0) target = $region37
    $region36: #{_forward_jit.1} parent=1 // pred_region
      _
    $region37: #{_forward_jit.1} parent=1 // pred_fallthru
      _
    // Predicated region
    $region38: #{_forward_jit.1} parent=1 // pred_check
      _
    $region39: #{_forward_jit.1} parent=1 // pred_check_branch
      %46 = sbr.rel (0) target = $region41
    $region40: #{_forward_jit.1} parent=1 // pred_region
      %47 = dma.done [#allocation4], 2048
    $region41: #{_forward_jit.1} parent=1 // pred_fallthru
      _
    %v49 = vld [vmem:[%s0] sm:$0xf]
    %v50 = vld [vmem:[%s0 + $0x4] sm:$0xf]
    %v51 = vld [vmem:[%s0 + $0x8] sm:$0xf]
    %v52 = vld [vmem:[%s1] sm:$0xff]
    %v53 = vld [vmem:[%s1 + $0x8] sm:$0xff]
    %v54 = vld [vmem:[%s1 + $0x10] sm:$0xff]
    %v55 = vld [vmem:[%s1 + $0x18] sm:$0xff]
    %v56 = vld [vmem:[%s2] sm:$0x3]
    %v58 = vlaneseq
    %v59 = vshrl.u32 %v58, 7
    %v60 = vsub.s32 0, %v59
    %v61 = vrot.slane %v56, %v60
    %v62 = vlaneseq
    %v63 = vshrl.u32 %v62, 7
    %v64 = vsub.s32 1, %v63
    %v65 = vrot.slane %v56, %v64
    %v71 = vunpack.c.l.b16 %v49
    %v72 = vunpack.c.l.b16 %v50
    %v73 = vunpack.c.l.b16 %v51
    %v74 = vpack.c.b16 %v72, %v71
    %v75 = vpack.c.b16 %v73, %v73
    %v80 = vunpack.c.l.b16 %v52
    %v81 = vunpack.c.h.b16 %v52
    %v82 = vunpack.c.l.b16 %v53
    %v83 = vunpack.c.h.b16 %v53
    %v84 = vunpack.c.l.b16 %v54
    %v85 = vunpack.c.h.b16 %v54
    %v86 = vunpack.c.l.b16 %v55
    %v87 = vunpack.c.h.b16 %v55
    %v88 = vpack.c.b16 %v82, %v80
    %v89 = vpack.c.b16 %v83, %v81
    %v90 = vpack.c.b16 %v86, %v84
    %v91 = vpack.c.b16 %v87, %v85
    %vm96 = vcmask 261120
    %v98 = vsel %vm96, %v74, 0
    %v101 = vsel %vm96, %v75, 0
    %103 = vmatprep.subr.bf16.mxu0 %v89
    %104 = vmatpush1.bf16.msra.mxu0 %v88
    %105 = vmatprep.subr.bf16.mxu0 %v91
    %106 = vmatpush1.bf16.msra.mxu0 %v90
    %107 = vmatprep.subr.bf16.mxu0 0
    %108 = vmatpush1.bf16.msra.mxu0 0
    %109 = vmatprep.subr.bf16.mxu0 0
    %110 = vmatpush1.bf16.msra.mxu0 0
    %111 = vmatprep.subr.bf16.mxu0 0
    %112 = vmatpush1.bf16.msra.mxu0 0
    %113 = vmatprep.subr.bf16.mxu0 0
    %114 = vmatpush1.bf16.msra.mxu0 0
    %115 = vmatprep.subr.bf16.mxu0 0
    %116 = vmatpush1.bf16.msra.mxu0 0
    %117 = vmatprep.subr.bf16.mxu0 0
    %118 = vmatpush1.bf16.msra.mxu0 0
    %119 = vmatprep.subr.bf16.mxu0 0
    %120 = vmatpush1.bf16.msra.mxu0 0
    %121 = vmatprep.subr.bf16.mxu0 0
    %122 = vmatpush1.bf16.msra.mxu0 0
    %123 = vmatprep.subr.bf16.mxu0 0
    %124 = vmatpush1.bf16.msra.mxu0 0
    %125 = vmatprep.subr.bf16.mxu0 0
    %126 = vmatpush1.bf16.msra.mxu0 0
    %127 = vmatprep.subr.bf16.mxu0 0
    %128 = vmatpush1.bf16.msra.mxu0 0
    %129 = vmatprep.subr.bf16.mxu0 0
    %130 = vmatpush1.bf16.msra.mxu0 0
    %131 = vmatprep.subr.bf16.mxu0 0
    %132 = vmatpush1.bf16.msra.mxu0 0
    %133 = vmatprep.subr.bf16.mxu0 0
    %134 = vmatpush1.bf16.msra.mxu0 0
    %135 = vmatprep.mubr.bf16.mxu0 0
    %136 = vmatmul.mubr.bf16.gmra.mrb[0].mxu0 %v98
    %v137 = vpop.f32.mrb[0].mxu0
    %v138 = vadd.f32 %v61, %v137
    %v139 = vpop.f32.mrb[0].mxu0
    %v140 = vadd.f32 %v65, %v139
    %v141 = vpop.f32.mrb[0].mxu0
    %v142 = vadd.f32 %v61, %v141
    %v143 = vpop.f32.mrb[0].mxu0
    %v144 = vadd.f32 %v65, %v143
    %145 = vmatprep.mubr.bf16.mxu0 0
    %146 = vmatmul.mubr.bf16.gmra.mrb[0].mxu0 %v101
    %v147 = vpop.f32.mrb[0].mxu0
    %v148 = vadd.f32 %v61, %v147
    %v149 = vpop.f32.mrb[0].mxu0
    %v150 = vadd.f32 %v65, %v149
    %v151 = vpop.f32.mrb[0].mxu0
    %v152 = vpop.f32.mrb[0].mxu0
    %153 = vdwg.mxu0
    %v154 = vmax.f32 %v138, 0.0
    %v155 = vmax.f32 %v140, 0.0
    %v156 = vmax.f32 %v142, 0.0
    %v157 = vmax.f32 %v144, 0.0
    %v158 = vmax.f32 %v148, 0.0
    %v159 = vmax.f32 %v150, 0.0
    %v160 = vpack.c.bf16 %v156, %v154
    %v161 = vpack.c.bf16 %v157, %v155
    %v162 = vpack.c.bf16 %v158, %v158
    %v163 = vpack.c.bf16 %v159, %v159
    %v164 = vld [vmem:[#allocation3] sm:$0xf]
    %v165 = vld [vmem:[#allocation3 + $0x4] sm:$0xf]
    %v166 = vld [vmem:[#allocation3 + $0x8] sm:$0xf]
    %v167 = vld [vmem:[#allocation3 + $0xc] sm:$0xf]
    %v168 = vld [vmem:[#allocation3 + $0x10] sm:$0xf]
    %v169 = vld [vmem:[#allocation3 + $0x14] sm:$0xf]
    %v170 = vld [vmem:[#allocation3 + $0x18] sm:$0xf]
    %v171 = vld [vmem:[#allocation3 + $0x1c] sm:$0xf]
    %v172 = vld [vmem:[#allocation3 + $0x20] sm:$0xf]
    %v173 = vld [vmem:[#allocation3 + $0x24] sm:$0xf]
    %v174 = vld [vmem:[#allocation3 + $0x28] sm:$0xf]
    %v175 = vld [vmem:[#allocation3 + $0x2c] sm:$0xf]
    %v176 = vld [vmem:[#allocation3 + $0x30] sm:$0xf]
    %v177 = vld [vmem:[#allocation3 + $0x34] sm:$0xf]
    %v178 = vld [vmem:[#allocation3 + $0x38] sm:$0xf]
    %v179 = vld [vmem:[#allocation3 + $0x3c] sm:$0xf]
    %v180 = vld [vmem:[#allocation3 + $0x40] sm:$0xf]
    %v181 = vld [vmem:[#allocation3 + $0x44] sm:$0xf]
    %v182 = vld [vmem:[#allocation3 + $0x48] sm:$0xf]
    %v183 = vld [vmem:[#allocation3 + $0x4c] sm:$0xf]
    %v184 = vld [vmem:[#allocation3 + $0x50] sm:$0xf]
    %v185 = vld [vmem:[#allocation3 + $0x54] sm:$0xf]
    %v186 = vld [vmem:[#allocation3 + $0x58] sm:$0xf]
    %v187 = vld [vmem:[#allocation3 + $0x5c] sm:$0xf]
    %v188 = vld [vmem:[#allocation3 + $0x60] sm:$0xf]
    %v189 = vld [vmem:[#allocation3 + $0x64] sm:$0xf]
    %v190 = vld [vmem:[#allocation3 + $0x68] sm:$0xf]
    %v191 = vld [vmem:[#allocation3 + $0x6c] sm:$0xf]
    %v192 = vld [vmem:[#allocation3 + $0x70] sm:$0xf]
    %v193 = vld [vmem:[#allocation3 + $0x74] sm:$0xf]
    %v194 = vld [vmem:[#allocation3 + $0x78] sm:$0xf]
    %v195 = vld [vmem:[#allocation3 + $0x7c] sm:$0xf]
    %v196 = vld [vmem:[%s4] sm:$0x1]
    %v198 = vlaneseq
    %v199 = vshrl.u32 %v198, 7
    %v200 = vsub.s32 0, %v199
    %v201 = vrot.slane %v196, %v200
    %v235 = vunpack.c.l.b16 %v164
    %v236 = vunpack.c.l.b16 %v165
    %v237 = vunpack.c.l.b16 %v166
    %v238 = vunpack.c.l.b16 %v167
    %v239 = vunpack.c.l.b16 %v168
    %v240 = vunpack.c.l.b16 %v169
    %v241 = vunpack.c.l.b16 %v170
    %v242 = vunpack.c.l.b16 %v171
    %v243 = vunpack.c.l.b16 %v172
    %v244 = vunpack.c.l.b16 %v173
    %v245 = vunpack.c.l.b16 %v174
    %v246 = vunpack.c.l.b16 %v175
    %v247 = vunpack.c.l.b16 %v176
    %v248 = vunpack.c.l.b16 %v177
    %v249 = vunpack.c.l.b16 %v178
    %v250 = vunpack.c.l.b16 %v179
    %v251 = vunpack.c.l.b16 %v180
    %v252 = vunpack.c.l.b16 %v181
    %v253 = vunpack.c.l.b16 %v182
    %v254 = vunpack.c.l.b16 %v183
    %v255 = vunpack.c.l.b16 %v184
    %v256 = vunpack.c.l.b16 %v185
    %v257 = vunpack.c.l.b16 %v186
    %v258 = vunpack.c.l.b16 %v187
    %v259 = vunpack.c.l.b16 %v188
    %v260 = vunpack.c.l.b16 %v189
    %v261 = vunpack.c.l.b16 %v190
    %v262 = vunpack.c.l.b16 %v191
    %v263 = vunpack.c.l.b16 %v192
    %v264 = vunpack.c.l.b16 %v193
    %v265 = vunpack.c.l.b16 %v194
    %v266 = vunpack.c.l.b16 %v195
    %v267 = vpack.c.b16 %v236, %v235
    %v268 = vpack.c.b16 %v238, %v237
    %v269 = vpack.c.b16 %v240, %v239
    %v270 = vpack.c.b16 %v242, %v241
    %v271 = vpack.c.b16 %v244, %v243
    %v272 = vpack.c.b16 %v246, %v245
    %v273 = vpack.c.b16 %v248, %v247
    %v274 = vpack.c.b16 %v250, %v249
    %v275 = vpack.c.b16 %v252, %v251
    %v276 = vpack.c.b16 %v254, %v253
    %v277 = vpack.c.b16 %v256, %v255
    %v278 = vpack.c.b16 %v258, %v257
    %v279 = vpack.c.b16 %v260, %v259
    %v280 = vpack.c.b16 %v262, %v261
    %v281 = vpack.c.b16 %v264, %v263
    %v282 = vpack.c.b16 %v266, %v265
    %299 = vmatprep.subr.bf16.mxu0 0
    %300 = vmatpush1.bf16.msra.mxu0 %v267
    %301 = vmatprep.subr.bf16.mxu0 0
    %302 = vmatpush1.bf16.msra.mxu0 %v268
    %303 = vmatprep.subr.bf16.mxu0 0
    %304 = vmatpush1.bf16.msra.mxu0 %v269
    %305 = vmatprep.subr.bf16.mxu0 0
    %306 = vmatpush1.bf16.msra.mxu0 %v270
    %307 = vmatprep.subr.bf16.mxu0 0
    %308 = vmatpush1.bf16.msra.mxu0 %v271
    %309 = vmatprep.subr.bf16.mxu0 0
    %310 = vmatpush1.bf16.msra.mxu0 %v272
    %311 = vmatprep.subr.bf16.mxu0 0
    %312 = vmatpush1.bf16.msra.mxu0 %v273
    %313 = vmatprep.subr.bf16.mxu0 0
    %314 = vmatpush1.bf16.msra.mxu0 %v274
    %315 = vmatprep.subr.bf16.mxu0 0
    %316 = vmatpush1.bf16.msra.mxu0 %v275
    %317 = vmatprep.subr.bf16.mxu0 0
    %318 = vmatpush1.bf16.msra.mxu0 %v276
    %319 = vmatprep.subr.bf16.mxu0 0
    %320 = vmatpush1.bf16.msra.mxu0 %v277
    %321 = vmatprep.subr.bf16.mxu0 0
    %322 = vmatpush1.bf16.msra.mxu0 %v278
    %323 = vmatprep.subr.bf16.mxu0 0
    %324 = vmatpush1.bf16.msra.mxu0 %v279
    %325 = vmatprep.subr.bf16.mxu0 0
    %326 = vmatpush1.bf16.msra.mxu0 %v280
    %327 = vmatprep.subr.bf16.mxu0 0
    %328 = vmatpush1.bf16.msra.mxu0 %v281
    %329 = vmatprep.subr.bf16.mxu0 0
    %330 = vmatpush1.bf16.msra.mxu0 %v282
    %331 = vmatprep.mubr.bf16.mxu0 %v161
    %332 = vmatmul.mubr.bf16.gmra.mrb[0].mxu0 %v160
    %v333 = vpop.f32.mrb[0].mxu0
    %v334 = vadd.f32 %v201, %v333
    %v335 = vpop.f32.mrb[0].mxu0
    %v336 = vpop.f32.mrb[0].mxu0
    %v337 = vadd.f32 %v201, %v336
    %v338 = vpop.f32.mrb[0].mxu0
    %339 = vmatprep.mubr.bf16.mxu0 %v163
    %340 = vmatmul.mubr.bf16.gmra.mrb[0].mxu0 %v162
    %v341 = vpop.f32.mrb[0].mxu0
    %v342 = vadd.f32 %v201, %v341
    %v343 = vpop.f32.mrb[0].mxu0
    %v344 = vpop.f32.mrb[0].mxu0
    %v345 = vpop.f32.mrb[0].mxu0
    %346 = vdwg.mxu0
    %v347 = vmax.f32 %v334, 0.0
    %v348 = vmax.f32 %v337, 0.0
    %v349 = vmax.f32 %v342, 0.0
    %v350 = vpack.c.bf16 %v348, %v347
    %v351 = vpack.c.bf16 %v349, %v349
    %v352 = vld [vmem:[%s5] sm:$0xf]
    %v353 = vld [vmem:[%s5 + $0x4] sm:$0xf]
    %v354 = vld [vmem:[%s5 + $0x8] sm:$0xf]
    %v355 = vld [vmem:[%s5 + $0xc] sm:$0xf]
    %v356 = vld [vmem:[%s5 + $0x10] sm:$0xf]
    %v357 = vld [vmem:[%s5 + $0x14] sm:$0xf]
    %v358 = vld [vmem:[%s5 + $0x18] sm:$0xf]
    %v359 = vld [vmem:[%s5 + $0x1c] sm:$0xf]
    %v360 = vld [vmem:[%s5 + $0x20] sm:$0xf]
    %v361 = vld [vmem:[%s5 + $0x24] sm:$0xf]
    %v362 = vld [vmem:[%s5 + $0x28] sm:$0xf]
    %v363 = vld [vmem:[%s5 + $0x2c] sm:$0xf]
    %v364 = vld [vmem:[%s5 + $0x30] sm:$0xf]
    %v365 = vld [vmem:[%s5 + $0x34] sm:$0xf]
    %v366 = vld [vmem:[%s5 + $0x38] sm:$0xf]
    %v367 = vld [vmem:[%s5 + $0x3c] sm:$0xf]
    %v368 = vld [vmem:[%s6] sm:$0x1]
    %v370 = vlaneseq
    %v371 = vshrl.u32 %v370, 7
    %v372 = vsub.s32 0, %v371
    %v373 = vrot.slane %v368, %v372
    %v391 = vunpack.c.l.b16 %v352
    %v392 = vunpack.c.l.b16 %v353
    %v393 = vunpack.c.l.b16 %v354
    %v394 = vunpack.c.l.b16 %v355
    %v395 = vunpack.c.l.b16 %v356
    %v396 = vunpack.c.l.b16 %v357
    %v397 = vunpack.c.l.b16 %v358
    %v398 = vunpack.c.l.b16 %v359
    %v399 = vunpack.c.l.b16 %v360
    %v400 = vunpack.c.l.b16 %v361
    %v401 = vunpack.c.l.b16 %v362
    %v402 = vunpack.c.l.b16 %v363
    %v403 = vunpack.c.l.b16 %v364
    %v404 = vunpack.c.l.b16 %v365
    %v405 = vunpack.c.l.b16 %v366
    %v406 = vunpack.c.l.b16 %v367
    %v407 = vpack.c.b16 %v392, %v391
    %v408 = vpack.c.b16 %v394, %v393
    %v409 = vpack.c.b16 %v396, %v395
    %v410 = vpack.c.b16 %v398, %v397
    %v411 = vpack.c.b16 %v400, %v399
    %v412 = vpack.c.b16 %v402, %v401
    %v413 = vpack.c.b16 %v404, %v403
    %v414 = vpack.c.b16 %v406, %v405
    %423 = vmatprep.subr.bf16.mxu0 0
    %424 = vmatpush1.bf16.msra.mxu0 %v407
    %425 = vmatprep.subr.bf16.mxu0 0
    %426 = vmatpush1.bf16.msra.mxu0 %v408
    %427 = vmatprep.subr.bf16.mxu0 0
    %428 = vmatpush1.bf16.msra.mxu0 %v409
    %429 = vmatprep.subr.bf16.mxu0 0
    %430 = vmatpush1.bf16.msra.mxu0 %v410
    %431 = vmatprep.subr.bf16.mxu0 0
    %432 = vmatpush1.bf16.msra.mxu0 %v411
    %433 = vmatprep.subr.bf16.mxu0 0
    %434 = vmatpush1.bf16.msra.mxu0 %v412
    %435 = vmatprep.subr.bf16.mxu0 0
    %436 = vmatpush1.bf16.msra.mxu0 %v413
    %437 = vmatprep.subr.bf16.mxu0 0
    %438 = vmatpush1.bf16.msra.mxu0 %v414
    %439 = vmatprep.subr.bf16.mxu0 0
    %440 = vmatpush1.bf16.msra.mxu0 0
    %441 = vmatprep.subr.bf16.mxu0 0
    %442 = vmatpush1.bf16.msra.mxu0 0
    %443 = vmatprep.subr.bf16.mxu0 0
    %444 = vmatpush1.bf16.msra.mxu0 0
    %445 = vmatprep.subr.bf16.mxu0 0
    %446 = vmatpush1.bf16.msra.mxu0 0
    %447 = vmatprep.subr.bf16.mxu0 0
    %448 = vmatpush1.bf16.msra.mxu0 0
    %449 = vmatprep.subr.bf16.mxu0 0
    %450 = vmatpush1.bf16.msra.mxu0 0
    %451 = vmatprep.subr.bf16.mxu0 0
    %452 = vmatpush1.bf16.msra.mxu0 0
    %453 = vmatprep.subr.bf16.mxu0 0
    %454 = vmatpush1.bf16.msra.mxu0 0
    %455 = vmatprep.mubr.bf16.mxu0 0
    %456 = vmatmul.mubr.bf16.gmra.mrb[0].mxu0 %v350
    %v457 = vpop.f32.mrb[0].mxu0
    %v458 = vadd.f32 %v373, %v457
    %v459 = vpop.f32.mrb[0].mxu0
    %v460 = vpop.f32.mrb[0].mxu0
    %v461 = vadd.f32 %v373, %v460
    %v462 = vpop.f32.mrb[0].mxu0
    %463 = vmatprep.mubr.bf16.mxu0 0
    %464 = vmatmul.mubr.bf16.gmra.mrb[0].mxu0 %v351
    %v465 = vpop.f32.mrb[0].mxu0
    %v466 = vadd.f32 %v373, %v465
    %v467 = vpop.f32.mrb[0].mxu0
    %v468 = vpop.f32.mrb[0].mxu0
    %v469 = vpop.f32.mrb[0].mxu0
    %470 = vdwg.mxu0
    %v471 = vmax.f32 %v458, 0.0
    %v472 = vmax.f32 %v461, 0.0
    %v473 = vmax.f32 %v466, 0.0
    %v474 = vld [vmem:[%s7] sm:$0x1]
    %v476 = vlaneseq
    %v477 = vshrl.u32 %v476, 7
    %v478 = vsub.s32 0, %v477
    %v479 = vrot.slane %v474, %v478
    %v481 = vmul.f32 %v471, %v479
    %v482 = vmul.f32 %v472, %v479
    %v483 = vmul.f32 %v473, %v479
    %484 = vadd.xlane.f32.xlu0 %v481
    %v485 = vpop.xlane.xlu0 %484
    %486 = vadd.xlane.f32.xlu0 %v482
    %v487 = vpop.xlane.xlu0 %486
    %488 = vadd.xlane.f32.xlu0 %v483
    %v489 = vpop.xlane.xlu0 %488
    %v490 = vld [vmem:[#allocation2] sm:$0x1]
    %v492 = vlaneseq
    %v493 = vshrl.u32 %v492, 7
    %v494 = vsub.s32 0, %v493
    %v495 = vrot.slane %v490, %v494
    %v497 = vadd.f32 %v485, %v495
    %v498 = vadd.f32 %v487, %v495
    %v499 = vadd.f32 %v489, %v495
    %vm500 = vcmask 7168
    %501 = vst.msk [vmem:[%s9] sm:$0xff] %vm500, %v497
    %502 = vst.msk [vmem:[%s9 + $0x8] sm:$0xff] %vm500, %v498
    %503 = vst.msk [vmem:[%s9 + $0x10] sm:$0xff] %vm500, %v499
    // Predicated region
    $region42: #{_forward_jit.1} parent=1 // pred_check
      _
    $region43: #{_forward_jit.1} parent=1 // pred_check_branch
      %505 = sbr.rel (0) target = $region45
    $region44: #{_forward_jit.1} parent=1 // pred_region
      _
    $region45: #{_forward_jit.1} parent=1 // pred_fallthru
      _
    // Predicated region
    $region46: #{_forward_jit.1} parent=1 // pred_check
      _
    $region47: #{_forward_jit.1} parent=1 // pred_check_branch
      %507 = sbr.rel (0) target = $region49
    $region48: #{_forward_jit.1} parent=1 // pred_region
      _
    $region49: #{_forward_jit.1} parent=1 // pred_fallthru
      _
    %508 = vsyncpa [#allocation4], 1

</llo_original>
